<compile_context>
chip_gen: v6e
topology: v6e:2x2x1
jax: 0.10.0
libtpu: 0.0.40
codegen_flags: <defaults>
</compile_context>

<pallas_src>
import math
from typing import NamedTuple, Optional

import jax
import jax.numpy as jnp
import numpy as np
from jax.experimental import pallas as pl
from jax.experimental.pallas import tpu as pltpu


def _round_up(a: int, b: int) -> int:
    return -(-a // b) * b


def _matmul_bias_kernel(x_ref, wt_ref, b_ref, o_ref, acc_ref):
    """One (tm, tn) output tile, accumulated over the K grid axis.

    x_ref:  (tm, tk)  (input dtype, cast to bf16 for the MXU)
    wt_ref: (tk, tn)  bf16 (pre-transposed, pre-padded weight)
    b_ref:  (1, tn)   f32
    o_ref:  (tm, tn)  output dtype
    acc_ref:(tm, tn)  f32 VMEM scratch, persists across the K axis
    """
    k = pl.program_id(2)

    prod = jnp.dot(
        x_ref[...].astype(jnp.bfloat16),
        wt_ref[...],
        preferred_element_type=jnp.float32,
    )

    @pl.when(k == 0)
    def _():
        # Fold the bias into the accumulator init: no zero-fill, no epilogue add.
        acc_ref[...] = prod + b_ref[...].astype(jnp.float32)

    @pl.when(k != 0)
    def _():
        acc_ref[...] += prod

    @pl.when(k == pl.num_programs(2) - 1)
    def _():
        o_ref[...] = acc_ref[...].astype(o_ref.dtype)


class RowParallelLinearParams(NamedTuple):
    w_t: jax.Array   # (k_p, n_p) bf16, pre-transposed + padded
    bias: jax.Array  # (1, n_p) f32, padded
    n: int
    k: int
    n_p: int
    k_p: int
    tn: int
    tk: int


def init_row_parallel_linear(
    weight: jax.Array,
    bias: Optional[jax.Array],
    *,
    tn: int = 512,
    tk: int = 512,
) -> RowParallelLinearParams:
    """One-time 'module init': transpose, pad to tile multiples, cast weight to bf16.

    weight: (N, K) torch-convention weight; bias: (N,) or None.
    Doing the pad/transpose/cast here keeps the per-forward path free of any
    full-weight HBM copies.
    """
    n, k = weight.shape
    tn = min(tn, _round_up(n, 128))
    tk = min(tk, _round_up(k, 128))
    n_p = _round_up(n, tn)
    k_p = _round_up(k, tk)

    w_t = weight.T.astype(jnp.bfloat16)
    if (k_p, n_p) != (k, n):
        # Zero K-padding contributes nothing to the reduction; padded N columns
        # are sliced off after the kernel.
        w_t = jnp.pad(w_t, ((0, k_p - k), (0, n_p - n)))

    if bias is None:
        b2 = jnp.zeros((1, n_p), jnp.float32)
    else:
        b2 = bias.reshape(1, n).astype(jnp.float32)
        if n_p != n:
            b2 = jnp.pad(b2, ((0, 0), (0, n_p - n)))

    return RowParallelLinearParams(w_t, b2, n, k, n_p, k_p, tn, tk)


def _vmem_limit_bytes() -> int:
    """~75% of physical VMEM (48 MiB on v7x, 96 MiB on v5e/v6e), capped at 100 MiB."""
    try:
        cap = int(pltpu.get_tpu_info().vmem_capacity_bytes)
    except Exception:
        cap = 64 * 1024 * 1024  # conservative fallback (safe on all generations)
    return min(cap * 3 // 4, 100 * 1024 * 1024)


def row_parallel_linear_fwd(
    x: jax.Array,
    params: RowParallelLinearParams,
    *,
    tm: int = 512,
) -> jax.Array:
    """y = x @ W.T + b using the pre-prepared params.  x: (..., K) -> (..., N)."""
    *lead, k = x.shape
    assert k == params.k, f"feature dim mismatch: {k} vs {params.k}"
    m = math.prod(lead) if lead else 1

    tn, tk = params.tn, params.tk
    n, n_p, k_p = params.n, params.n_p, params.k_p

    # Pick tm so the padded M hugs the true M (minimal wasted MXU work / x DMA),
    # while staying a sublane (8) multiple for (8,128) tiling.
    num_m_tiles = -(-m // tm)
    tm = min(tm, _round_up(-(-m // num_m_tiles), 8))
    m_p = _round_up(m, tm)

    x2 = x.reshape(m, k)
    if (m_p, k_p) != (m, k):
        x2 = jnp.pad(x2, ((0, m_p - m), (0, k_p - k)))

    gm, gn, gk = m_p // tm, n_p // tn, k_p // tk

    # Grid ordering: for decode-like (few M tiles) shapes, lead with N so
    # megacore sharding (v7x: 2 TensorCores) splits the weight stream instead of
    # duplicating it.  Reduction axis (K) stays last.
    n_major = gm < gn
    if n_major:
        grid = (gn, gm, gk)
        x_map = lambda j, i, kk: (i, kk)
        w_map = lambda j, i, kk: (kk, j)
        b_map = lambda j, i, kk: (0, j)
        o_map = lambda j, i, kk: (i, j)
    else:
        grid = (gm, gn, gk)
        x_map = lambda i, j, kk: (i, kk)
        w_map = lambda i, j, kk: (kk, j)
        b_map = lambda i, j, kk: (0, j)
        o_map = lambda i, j, kk: (i, j)

    # Triple-buffer the weight stream only when memory-bound (small M) and the
    # K loop is real; otherwise the default double buffering is enough.
    if m_p <= 512 and gk >= 2:
        w_spec = pl.BlockSpec((tk, tn), w_map, pipeline_mode=pl.Buffered(3))
    else:
        w_spec = pl.BlockSpec((tk, tn), w_map)

    out_dtype = x.dtype
    cost = pl.CostEstimate(
        flops=2 * m_p * n_p * k_p,
        bytes_accessed=(
            gn * m_p * k_p * x2.dtype.itemsize          # x re-streamed per N tile
            + gm * k_p * n_p * params.w_t.dtype.itemsize  # W re-streamed per M tile
            + n_p * params.bias.dtype.itemsize
            + m_p * n_p * jnp.dtype(out_dtype).itemsize
        ),
        transcendentals=0,
    )

    out = pl.pallas_call(
        _matmul_bias_kernel,
        out_shape=jax.ShapeDtypeStruct((m_p, n_p), out_dtype),
        grid_spec=pltpu.PrefetchScalarGridSpec(
            num_scalar_prefetch=0,
            grid=grid,
            in_specs=[
                pl.BlockSpec((tm, tk), x_map),
                w_spec,
                pl.BlockSpec((1, tn), b_map),
            ],
            out_specs=pl.BlockSpec((tm, tn), o_map),
            scratch_shapes=[pltpu.VMEM((tm, tn), jnp.float32)],
        ),
        compiler_params=pltpu.CompilerParams(
            dimension_semantics=("parallel", "parallel", "arbitrary"),
            vmem_limit_bytes=_vmem_limit_bytes(),
        ),
        cost_estimate=cost,
    )(x2, params.w_t, params.bias)

    return out[:m, :n].reshape(*lead, n)


if __name__ == "__main__":
    # Module hyper-parameters (world_size = 1 => input_size_per_partition = input_size).
    input_size = 32
    output_size = 32
    batch, seq = 2, 8

    key = jax.random.PRNGKey(0)
    k_x, k_w, k_b = jax.random.split(key, 3)

    # weight ~ N(0, 0.02) as in the module's distributed-init branch; a nonzero
    # bias is used here so the fused bias path is actually exercised (forward
    # semantics are y = x @ W.T + b for whatever b holds).
    weight = (0.02 * jax.random.normal(k_w, (output_size, input_size))).astype(jnp.float32)
    bias = (0.1 * jax.random.normal(k_b, (output_size,))).astype(jnp.float32)
    x = jax.random.normal(k_x, (batch, seq, input_size), dtype=jnp.float32)

    # "Module init": transpose + pad + bf16-cast the weight once.
    params = init_row_parallel_linear(weight, bias)

    fwd = jax.jit(lambda xx: row_parallel_linear_fwd(xx, params))
    y = jax.block_until_ready(fwd(x))

    # Correctness check against plain-JAX reference of the PyTorch forward.
    # bf16 MXU operands + f32 accumulation -> loosened tolerance vs pure-f32 ref.
    y_ref = x @ weight.T + bias
    assert y.shape == (batch, seq, output_size)
    np.testing.assert_allclose(np.asarray(y), np.asarray(y_ref), rtol=3e-2, atol=3e-3)

    print("KERNEL_OK")
</pallas_src>

<mosaic_0001>
module attributes {stable_mosaic.version = 11 : i64} {
  func.func @_matmul_bias_kernel(%arg0: i32, %arg1: i32, %arg2: i32, %arg3: memref<16x128xf32, #tpu.memory_space<vmem>>, %arg4: memref<128x128xbf16, #tpu.memory_space<vmem>>, %arg5: memref<1x128xf32, #tpu.memory_space<vmem>>, %arg6: memref<16x128xf32, #tpu.memory_space<vmem>>, %arg7: memref<16x128xf32, #tpu.memory_space<vmem>>) attributes {dimension_semantics = [#tpu.dimension_semantics<parallel>, #tpu.dimension_semantics<parallel>, #tpu.dimension_semantics<arbitrary>], iteration_bounds = array<i64: 1, 1, 1>, scalar_prefetch = 0 : i64, scratch_operands = 1 : i64, tpu.core_type = #tpu.core_type<tc>, window_params = [{transform_indices = @transform_0, window_bounds = array<i64: 16, 128>}, {transform_indices = @transform_1, window_bounds = array<i64: 128, 128>}, {transform_indices = @transform_2, window_bounds = array<i64: 1, 128>}, {transform_indices = @transform_3, window_bounds = array<i64: 16, 128>}]} {
    %c0 = arith.constant 0 : index
    %c0_0 = arith.constant 0 : index
    %0 = vector.load %arg3[%c0, %c0_0] : memref<16x128xf32, #tpu.memory_space<vmem>>, vector<16x128xf32>
    %1 = arith.truncf %0 : vector<16x128xf32> to vector<16x128xbf16>
    %c0_1 = arith.constant 0 : index
    %c0_2 = arith.constant 0 : index
    %2 = vector.load %arg4[%c0_1, %c0_2] : memref<128x128xbf16, #tpu.memory_space<vmem>>, vector<128x128xbf16>
    %cst = arith.constant dense<0.000000e+00> : vector<16x128xf32>
    %3 = tpu.matmul %1, %2, %cst {dimension_numbers = #tpu.dot_dimension_numbers<[1], [0], [0], [1], [0, 0, 1, 1], [], []>} : vector<16x128xbf16>, vector<128x128xbf16>, vector<16x128xf32> -> vector<16x128xf32>
    %c0_i32 = arith.constant 0 : i32
    %4 = arith.cmpi eq, %arg2, %c0_i32 : i32
    %5 = arith.extui %4 : i1 to i32
    %c0_i32_3 = arith.constant 0 : i32
    %6 = arith.cmpi ne, %5, %c0_i32_3 : i32
    scf.if %6 {
      %c0_8 = arith.constant 0 : index
      %c0_9 = arith.constant 0 : index
      %13 = vector.load %arg5[%c0_8, %c0_9] : memref<1x128xf32, #tpu.memory_space<vmem>>, vector<1x128xf32>
      %14 = vector.broadcast %13 : vector<1x128xf32> to vector<16x128xf32>
      %15 = arith.addf %3, %14 : vector<16x128xf32>
      %c0_10 = arith.constant 0 : index
      %c0_11 = arith.constant 0 : index
      %16 = vector.load %arg7[%c0_10, %c0_11] : memref<16x128xf32, #tpu.memory_space<vmem>>, vector<16x128xf32>
      tpu.vector_store %arg7[%c0_10, %c0_11], %15 {strides = array<i32>} : memref<16x128xf32, #tpu.memory_space<vmem>>, vector<16x128xf32>,
    } else {
    }
    %c0_i32_4 = arith.constant 0 : i32
    %7 = arith.cmpi ne, %arg2, %c0_i32_4 : i32
    %8 = arith.extui %7 : i1 to i32
    %c0_i32_5 = arith.constant 0 : i32
    %9 = arith.cmpi ne, %8, %c0_i32_5 : i32
    scf.if %9 {
      %c0_8 = arith.constant 0 : index
      %c0_9 = arith.constant 0 : index
      %13 = vector.load %arg7[%c0_8, %c0_9] : memref<16x128xf32, #tpu.memory_space<vmem>>, vector<16x128xf32>
      %14 = arith.addf %13, %3 : vector<16x128xf32>
      %c0_10 = arith.constant 0 : index
      %c0_11 = arith.constant 0 : index
      %15 = vector.load %arg7[%c0_10, %c0_11] : memref<16x128xf32, #tpu.memory_space<vmem>>, vector<16x128xf32>
      tpu.vector_store %arg7[%c0_10, %c0_11], %14 {strides = array<i32>} : memref<16x128xf32, #tpu.memory_space<vmem>>, vector<16x128xf32>,
    } else {
    }
    %c0_i32_6 = arith.constant 0 : i32
    %10 = arith.cmpi eq, %arg2, %c0_i32_6 : i32
    %11 = arith.extui %10 : i1 to i32
    %c0_i32_7 = arith.constant 0 : i32
    %12 = arith.cmpi ne, %11, %c0_i32_7 : i32
    scf.if %12 {
      %c0_8 = arith.constant 0 : index
      %c0_9 = arith.constant 0 : index
      %13 = vector.load %arg7[%c0_8, %c0_9] : memref<16x128xf32, #tpu.memory_space<vmem>>, vector<16x128xf32>
      %c0_10 = arith.constant 0 : index
      %c0_11 = arith.constant 0 : index
      %14 = vector.load %arg6[%c0_10, %c0_11] : memref<16x128xf32, #tpu.memory_space<vmem>>, vector<16x128xf32>
      tpu.vector_store %arg6[%c0_10, %c0_11], %13 {strides = array<i32>} : memref<16x128xf32, #tpu.memory_space<vmem>>, vector<16x128xf32>,
    } else {
    }
    return
  }
  func.func @transform_0(%arg0: i32, %arg1: i32, %arg2: i32) -> (i32, i32) {
    %c0_i32 = arith.constant 0 : i32
    return %arg0, %arg2 : i32, i32
  }
  func.func @transform_1(%arg0: i32, %arg1: i32, %arg2: i32) -> (i32, i32) {
    %c0_i32 = arith.constant 0 : i32
    return %arg2, %arg1 : i32, i32
  }
  func.func @transform_2(%arg0: i32, %arg1: i32, %arg2: i32) -> (i32, i32) {
    %c0_i32 = arith.constant 0 : i32
    %c0_i32_0 = arith.constant 0 : i32
    return %c0_i32, %arg1 : i32, i32
  }
  func.func @transform_3(%arg0: i32, %arg1: i32, %arg2: i32) -> (i32, i32) {
    %c0_i32 = arith.constant 0 : i32
    return %arg0, %arg1 : i32, i32
  }
}

</mosaic_0001>

<llo_original>
// kernel: _lambda_.1
$region0: #{_lambda_.1}
  #allocation0 [shape = 'u32[]', space=smem, size = 0x4, offset = 0x4, fixed_abs, tag = 'smem constant byte address 0x4 - core index']
  #allocation1 [shape = 'u32[144,128]{1,0:T(1,128)}', space=vmem, size = 0x12000, scoped, tag = 'internal scratch']
  #allocation2 [shape = 'f32[16,128]{1,0:T(8,128)}', space=vmem, size = 0x2000, scoped, tag = 'scratch operand']
  %s0 = inlined_call_operand.vmem [shape: f32[16,128], index: 0, kind: input, shape index: {}]
  %s1 = inlined_call_operand.hbm [shape: bf16[128,128], index: 1, kind: input, shape index: {}]
  %s2 = inlined_call_operand.vmem [shape: f32[1,128], index: 2, kind: input, shape index: {}]
  %s3 = inlined_call_operand.vmem [shape: f32[16,128], index: 3, kind: output, shape index: {}]
  %s4 = sld [smem:[#allocation0]]
  $region38: #{_lambda_.1} parent=0
    _
  %s6 = ssub.s32 1, %s4
  %s7 = scalar_select 0, %s6, %s4
  $region1: #{_lambda_.1} parent=0
    #allocation3 [shape = 'u8[32768]{0}', space=vmem, size = 0x8000, scoped, tag = 'input window, operand 1, single buffered']
    #allocation4 [shape = 's32[1]{0}', space=sflag, size = 0x4, scoped, tag = 'scoped memory for _lambda_.1']
    %8 = vsyncpa [#allocation4], 0
    // Predicated region
    $region2: #{_lambda_.1} parent=1 // pred_check
      _
    $region3: #{_lambda_.1} parent=1 // pred_check_branch
      %10 = sbr.rel (0) target = $region5
    $region4: #{_lambda_.1} parent=1 // pred_region
      _
    $region5: #{_lambda_.1} parent=1 // pred_fallthru
      _
    // Predicated region
    $region6: #{_lambda_.1} parent=1 // pred_check
      _
    $region7: #{_lambda_.1} parent=1 // pred_check_branch
      %12 = sbr.rel (0) target = $region9
    $region8: #{_lambda_.1} parent=1 // pred_region
      %s14 = ssub.s32 1024, 1024
      %15 = vsyncadd [#allocation4], %s14
      %s16 = sshll.u32 [#allocation3], 4
      %s17 = int_to_ptr.vmem [resolvable:$true] %s16
      %22 = dma.hbm_to_vmem [thread:$0]  %s1, 1024, %s17, [#allocation4], 64, 64, 4
    $region9: #{_lambda_.1} parent=1 // pred_fallthru
      _
    // Predicated region
    $region10: #{_lambda_.1} parent=1 // pred_check
      _
    $region11: #{_lambda_.1} parent=1 // pred_check_branch
      %24 = sbr.rel (0) target = $region13
    $region12: #{_lambda_.1} parent=1 // pred_region
      _
    $region13: #{_lambda_.1} parent=1 // pred_fallthru
      _
    // Predicated region
    $region14: #{_lambda_.1} parent=1 // pred_check
      _
    $region15: #{_lambda_.1} parent=1 // pred_check_branch
      %26 = sbr.rel (0) target = $region17
    $region16: #{_lambda_.1} parent=1 // pred_region
      %27 = dma.done [#allocation4], 1024
    $region17: #{_lambda_.1} parent=1 // pred_fallthru
      _
    %v29 = vld [vmem:[%s0] sm:$0xff]
    %v30 = vld [vmem:[%s0 + $0x8] sm:$0xff]
    %v31 = vpack.c.bf16 %v30, %v29
    %v32 = vld [vmem:[#allocation3] sm:$0xf]
    %v33 = vld [vmem:[#allocation3 + $0x4] sm:$0xf]
    %v34 = vld [vmem:[#allocation3 + $0x8] sm:$0xf]
    %v35 = vld [vmem:[#allocation3 + $0xc] sm:$0xf]
    %v36 = vld [vmem:[#allocation3 + $0x10] sm:$0xf]
    %v37 = vld [vmem:[#allocation3 + $0x14] sm:$0xf]
    %v38 = vld [vmem:[#allocation3 + $0x18] sm:$0xf]
    %v39 = vld [vmem:[#allocation3 + $0x1c] sm:$0xf]
    %v40 = vld [vmem:[#allocation3 + $0x20] sm:$0xf]
    %v41 = vld [vmem:[#allocation3 + $0x24] sm:$0xf]
    %v42 = vld [vmem:[#allocation3 + $0x28] sm:$0xf]
    %v43 = vld [vmem:[#allocation3 + $0x2c] sm:$0xf]
    %v44 = vld [vmem:[#allocation3 + $0x30] sm:$0xf]
    %v45 = vld [vmem:[#allocation3 + $0x34] sm:$0xf]
    %v46 = vld [vmem:[#allocation3 + $0x38] sm:$0xf]
    %v47 = vld [vmem:[#allocation3 + $0x3c] sm:$0xf]
    %v64 = vunpack.c.l.b16 %v32
    %v65 = vunpack.c.l.b16 %v33
    %v66 = vunpack.c.l.b16 %v34
    %v67 = vunpack.c.l.b16 %v35
    %v68 = vunpack.c.l.b16 %v36
    %v69 = vunpack.c.l.b16 %v37
    %v70 = vunpack.c.l.b16 %v38
    %v71 = vunpack.c.l.b16 %v39
    %v72 = vunpack.c.l.b16 %v40
    %v73 = vunpack.c.l.b16 %v41
    %v74 = vunpack.c.l.b16 %v42
    %v75 = vunpack.c.l.b16 %v43
    %v76 = vunpack.c.l.b16 %v44
    %v77 = vunpack.c.l.b16 %v45
    %v78 = vunpack.c.l.b16 %v46
    %v79 = vunpack.c.l.b16 %v47
    %v80 = vpack.c.b16 %v65, %v64
    %v81 = vpack.c.b16 %v67, %v66
    %v82 = vpack.c.b16 %v69, %v68
    %v83 = vpack.c.b16 %v71, %v70
    %v84 = vpack.c.b16 %v73, %v72
    %v85 = vpack.c.b16 %v75, %v74
    %v86 = vpack.c.b16 %v77, %v76
    %v87 = vpack.c.b16 %v79, %v78
    %96 = vmatprep.subr.bf16.mxu0 0
    %97 = vmatpush1.bf16.msra.mxu0 %v87
    %98 = vmatprep.subr.bf16.mxu0 0
    %99 = vmatpush1.bf16.msra.mxu0 %v86
    %100 = vmatprep.subr.bf16.mxu0 0
    %101 = vmatpush1.bf16.msra.mxu0 %v85
    %102 = vmatprep.subr.bf16.mxu0 0
    %103 = vmatpush1.bf16.msra.mxu0 %v84
    %104 = vmatprep.subr.bf16.mxu0 0
    %105 = vmatpush1.bf16.msra.mxu0 %v83
    %106 = vmatprep.subr.bf16.mxu0 0
    %107 = vmatpush1.bf16.msra.mxu0 %v82
    %108 = vmatprep.subr.bf16.mxu0 0
    %109 = vmatpush1.bf16.msra.mxu0 %v81
    %110 = vmatprep.subr.bf16.mxu0 0
    %111 = vmatpush1.bf16.msra.mxu0 %v80
    %112 = vmatprep.subr.bf16.mxu0 0
    %113 = vmatpush2.bf16.msra.mxu0 0
    %114 = vmatprep.subr.bf16.mxu0 0
    %115 = vmatpush2.bf16.msra.mxu0 0
    %116 = vmatprep.subr.bf16.mxu0 0
    %117 = vmatpush2.bf16.msra.mxu0 0
    %118 = vmatprep.subr.bf16.mxu0 0
    %119 = vmatpush2.bf16.msra.mxu0 0
    %120 = vmatprep.subr.bf16.mxu0 0
    %121 = vmatpush2.bf16.msra.mxu0 0
    %122 = vmatprep.subr.bf16.mxu0 0
    %123 = vmatpush2.bf16.msra.mxu0 0
    %124 = vmatprep.subr.bf16.mxu0 0
    %125 = vmatpush2.bf16.msra.mxu0 0
    %126 = vmatprep.subr.bf16.mxu0 0
    %127 = vmatpush2.bf16.msra.mxu0 0
    %128 = vmatprep.mubr.bf16.mxu0 0
    %129 = vmatmul.mubr.bf16.gmra.mxu0 %v31
    %v130 = vpop.f32.mrf.mxu0
    %v131 = vadd.f32 0.0, %v130
    %v132 = vpop.f32.mrf.mxu0
    %v133 = vpop.f32.mrf.mxu0
    %v134 = vadd.f32 0.0, %v133
    %v135 = vpop.f32.mrf.mxu0
    %136 = vdwg.mxu0
    %p137 = scmp.eq.s32.totalorder 0, 0
    // Predicated region
    $region18: #{_lambda_.1} parent=1 // pred_check
      %p138 = pneg %p137
    $region19: #{_lambda_.1} parent=1 // pred_check_branch
      %140 = sbr.rel (%p138) target = $region21
    $region20: #{_lambda_.1} parent=1 // pred_region
      %v141 = vld [vmem:[%s2] sm:$0x1]
      %v143 = vlaneseq
      %v144 = vshrl.u32 %v143, 7
      %v145 = vsub.s32 0, %v144
      %v146 = vrot.slane %v141, %v145
      %v148 = vadd.f32 %v131, %v146
      %v149 = vadd.f32 %v134, %v146
      %150 = vst [vmem:[#allocation2] sm:$0xff] %v148
      %151 = vst [vmem:[#allocation2 + $0x8] sm:$0xff] %v149
    $region21: #{_lambda_.1} parent=1 // pred_fallthru
      _
    %p152 = scmp.ne.s32.totalorder 0, 0
    // Predicated region
    $region22: #{_lambda_.1} parent=1 // pred_check
      %p153 = pneg %p152
    $region23: #{_lambda_.1} parent=1 // pred_check_branch
      %155 = sbr.rel (%p153) target = $region25
    $region24: #{_lambda_.1} parent=1 // pred_region
      %v156 = vld [vmem:[#allocation2] sm:$0xff]
      %v157 = vld [vmem:[#allocation2 + $0x8] sm:$0xff]
      %v158 = vadd.f32 %v156, %v131
      %v159 = vadd.f32 %v157, %v134
      %160 = vst [vmem:[#allocation2] sm:$0xff] %v158
      %161 = vst [vmem:[#allocation2 + $0x8] sm:$0xff] %v159
    $region25: #{_lambda_.1} parent=1 // pred_fallthru
      _
    // Predicated region
    $region26: #{_lambda_.1} parent=1 // pred_check
      %p162 = pneg %p137
    $region27: #{_lambda_.1} parent=1 // pred_check_branch
      %164 = sbr.rel (%p162) target = $region29
    $region28: #{_lambda_.1} parent=1 // pred_region
      %v165 = vld [vmem:[#allocation2] sm:$0xff]
      %v166 = vld [vmem:[#allocation2 + $0x8] sm:$0xff]
      %167 = vst [vmem:[%s3] sm:$0xff] %v165
      %168 = vst [vmem:[%s3 + $0x8] sm:$0xff] %v166
    $region29: #{_lambda_.1} parent=1 // pred_fallthru
      _
    // Predicated region
    $region30: #{_lambda_.1} parent=1 // pred_check
      _
    $region31: #{_lambda_.1} parent=1 // pred_check_branch
      %170 = sbr.rel (0) target = $region33
    $region32: #{_lambda_.1} parent=1 // pred_region
      _
    $region33: #{_lambda_.1} parent=1 // pred_fallthru
      _
    // Predicated region
    $region34: #{_lambda_.1} parent=1 // pred_check
      _
    $region35: #{_lambda_.1} parent=1 // pred_check_branch
      %172 = sbr.rel (0) target = $region37
    $region36: #{_lambda_.1} parent=1 // pred_region
      _
    $region37: #{_lambda_.1} parent=1 // pred_fallthru
      _
    %173 = vsyncpa [#allocation4], 1

</llo_original>
